<compile_context>
chip_gen: v6e
topology: v6e:2x2x1
jax: 0.10.0
libtpu: 0.0.40
codegen_flags: <defaults>
</compile_context>

<pallas_src>
import functools

import jax
import jax.numpy as jnp
from jax.experimental import pallas as pl
from jax.experimental.pallas import tpu as pltpu


def _round_up(v, m):
    return ((v + m - 1) // m) * m


# ----------------------------- kernels ---------------------------------------

def _mlp_block(x, w1, b1, w2, b2, compute_dtype):
    # Two MXU matmuls (f32 accumulate) + sigmoids on VPU/EUP, everything VMEM resident.
    h = jnp.dot(x.astype(compute_dtype), w1.astype(compute_dtype),
                preferred_element_type=jnp.float32) + b1
    h = jax.nn.sigmoid(h)
    o = jnp.dot(h.astype(compute_dtype), w2.astype(compute_dtype),
                preferred_element_type=jnp.float32) + b2
    return jax.nn.sigmoid(o)                                      # (TB, C) f32


def mlp_kernel(x_ref, w1_ref, b1_ref, w2_ref, b2_ref, out_ref, *, compute_dtype):
    # w2/b2 arrive column-padded to a 128 multiple -> lane-dense (TB, out_cols) store.
    out_ref[...] = _mlp_block(
        x_ref[...], w1_ref[...], b1_ref[...], w2_ref[...], b2_ref[...], compute_dtype
    ).astype(out_ref.dtype)


def mlp_ce_partial_kernel(x_ref, w1_ref, b1_ref, w2_ref, b2_ref, y_ref, partial_ref,
                          *, batch, tb, compute_dtype):
    # Fused forward + per-tile CrossEntropy partial sum (integer class targets).
    # y_pred never leaves VMEM; only a (1,1,128) partial-sum block is written per tile.
    i = pl.program_id(0)

    o = _mlp_block(x_ref[...], w1_ref[...], b1_ref[...], w2_ref[...], b2_ref[...],
                   compute_dtype)                                 # (TB, C) f32

    m = jnp.max(o, axis=-1, keepdims=True)
    shifted = o - m
    lse = jnp.log(jnp.sum(jnp.exp(shifted), axis=-1, keepdims=True))
    log_probs = shifted - lse                                     # (TB, C)

    classes = jax.lax.broadcasted_iota(jnp.int32, o.shape, 1)
    onehot = (classes == y_ref[...]).astype(jnp.float32)          # (TB, C)
    nll = -jnp.sum(onehot * log_probs, axis=-1, keepdims=True)    # (TB, 1)

    # Mask rows that are batch-padding (ragged-batch handling).
    rows = jax.lax.broadcasted_iota(jnp.int32, (tb, 1), 0) + i * tb
    nll = jnp.where(rows < batch, nll, 0.0)

    tile_sum = jnp.sum(nll)
    partial_ref[...] = jnp.zeros(partial_ref.shape, jnp.float32) + tile_sum


# ----------------------------- wrapper ----------------------------------------

def _pick_batch_tile(batch, row_bytes, cap=4096, vmem_budget=24 << 20):
    """Largest balanced batch tile (multiple of 8) under both the row cap and a VMEM budget.

    Budget is derived against the smallest scoped-VMEM default across generations
    (v7x: 32 MiB scoped of 64 MiB physical); v5e/v6e (128 MiB) have more headroom.
    """
    cap = max(8, min(cap, (vmem_budget // max(row_bytes, 1)) // 8 * 8))
    n_tiles = max(1, pl.cdiv(batch, cap))
    tb = pl.cdiv(batch, n_tiles)          # balanced tiles -> minimal padding waste
    return max(8, _round_up(tb, 8))


def torch_model_forward(x, w1, b1, w2, b2, y=None, compute_dtype=jnp.float32):
    """Reproduces TorchModel.forward: returns y_pred if y is None, else scalar mean CE loss."""
    batch, input_dim = x.shape
    hidden_dim = w1.shape[1]
    output_dim = w2.shape[1]

    b1r = b1.reshape(1, hidden_dim)
    b2r = b2.reshape(1, output_dim)

    xbytes = jnp.dtype(x.dtype).itemsize
    out_cols = _round_up(max(output_dim, 128), 128)   # lane-dense store width

    # Rough per-row VMEM footprint: double-buffered x + out tiles + live activations.
    row_bytes = (xbytes * 2 * input_dim
                 + 4 * (2 * out_cols + hidden_dim + 2 * output_dim) + 8)
    tb = _pick_batch_tile(batch, row_bytes)
    grid_n = pl.cdiv(batch, tb)
    padded_batch = grid_n * tb

    x_in = x if padded_batch == batch else jnp.pad(x, ((0, padded_batch - batch), (0, 0)))

    # Batch-tiled activations; weights/biases are full VMEM blocks, resident across grid steps.
    x_spec = pl.BlockSpec((tb, input_dim), lambda i: (i, 0))
    w1_spec = pl.BlockSpec((input_dim, hidden_dim), lambda i: (0, 0))
    b1_spec = pl.BlockSpec((1, hidden_dim), lambda i: (0, 0))

    mm_flops = 2 * batch * (input_dim * hidden_dim + hidden_dim * output_dim)
    param_bytes = 4 * (w1.size + b1.size + w2.size + b2.size)

    if y is None:
        # Zero-pad W2/b2 columns so the output block is a full 128-lane multiple; the pad
        # columns hold sigmoid(0)=0.5 and are sliced away below.
        if out_cols != output_dim:
            w2p = jnp.pad(w2, ((0, 0), (0, out_cols - output_dim)))
            b2p = jnp.pad(b2r, ((0, 0), (0, out_cols - output_dim)))
        else:
            w2p, b2p = w2, b2r

        cost = pl.CostEstimate(
            flops=mm_flops,
            transcendentals=batch * (hidden_dim + output_dim),
            bytes_accessed=xbytes * x.size + 4 * padded_batch * out_cols + param_bytes)

        out = pl.pallas_call(
            functools.partial(mlp_kernel, compute_dtype=compute_dtype),
            out_shape=jax.ShapeDtypeStruct((padded_batch, out_cols), jnp.float32),
            grid=(grid_n,),
            in_specs=[x_spec, w1_spec, b1_spec,
                      pl.BlockSpec((hidden_dim, out_cols), lambda i: (0, 0)),
                      pl.BlockSpec((1, out_cols), lambda i: (0, 0))],
            out_specs=pl.BlockSpec((tb, out_cols), lambda i: (i, 0)),
            compiler_params=pltpu.CompilerParams(
                dimension_semantics=("parallel",)),
            cost_estimate=cost,
        )(x_in, w1, b1r, w2p, b2p)
        return out[:batch, :output_dim]

    labels = y.astype(jnp.int32).reshape(batch, 1)
    if padded_batch != batch:
        labels = jnp.pad(labels, ((0, padded_batch - batch), (0, 0)))

    cost = pl.CostEstimate(
        flops=mm_flops + 6 * batch * output_dim,
        transcendentals=batch * (hidden_dim + 2 * output_dim),
        bytes_accessed=xbytes * x.size + 4 * (labels.size + grid_n * 128) + param_bytes)

    partials = pl.pallas_call(
        functools.partial(mlp_ce_partial_kernel, batch=batch, tb=tb,
                          compute_dtype=compute_dtype),
        out_shape=jax.ShapeDtypeStruct((grid_n, 1, 128), jnp.float32),
        grid=(grid_n,),
        in_specs=[x_spec, w1_spec, b1_spec,
                  pl.BlockSpec((hidden_dim, output_dim), lambda i: (0, 0)),
                  pl.BlockSpec((1, output_dim), lambda i: (0, 0)),
                  pl.BlockSpec((tb, 1), lambda i: (i, 0))],
        out_specs=pl.BlockSpec((1, 1, 128), lambda i: (i, 0, 0)),
        compiler_params=pltpu.CompilerParams(
            dimension_semantics=("parallel",)),   # per-tile partials -> both TCs on v7x
        cost_estimate=cost,
    )(x_in, w1, b1r, w2, b2r, labels)
    return jnp.sum(partials[:, 0, 0]) * (1.0 / batch)   # mean over the real batch


# ----------------------------- driver ------------------------------------------

if __name__ == "__main__":
    input_dim, hidden_dim, output_dim = 32, 32, 8
    batch = 8

    key = jax.random.PRNGKey(0)
    kx, kw1, kb1, kw2, kb2, ky = jax.random.split(key, 6)

    # deterministic parameter init (PyTorch-style uniform(-1/sqrt(fan_in), 1/sqrt(fan_in)))
    lim1 = 1.0 / (input_dim ** 0.5)
    lim2 = 1.0 / (hidden_dim ** 0.5)
    w1 = jax.random.uniform(kw1, (input_dim, hidden_dim), jnp.float32, -lim1, lim1)
    b1 = jax.random.uniform(kb1, (hidden_dim,), jnp.float32, -lim1, lim1)
    w2 = jax.random.uniform(kw2, (hidden_dim, output_dim), jnp.float32, -lim2, lim2)
    b2 = jax.random.uniform(kb2, (output_dim,), jnp.float32, -lim2, lim2)

    def jax_ref(xv, yv):
        h = jax.nn.sigmoid(xv @ w1 + b1)
        yp = jax.nn.sigmoid(h @ w2 + b2)
        lp = jax.nn.log_softmax(yp, axis=-1)
        return yp, -jnp.mean(lp[jnp.arange(xv.shape[0]), yv])

    # --- aligned batch ---
    x = jax.random.normal(kx, (batch, input_dim), jnp.float32)
    y = jax.random.randint(ky, (batch,), 0, output_dim, jnp.int32)

    y_pred = jax.block_until_ready(torch_model_forward(x, w1, b1, w2, b2))
    loss = jax.block_until_ready(torch_model_forward(x, w1, b1, w2, b2, y=y))

    yp_ref, loss_ref = jax_ref(x, y)
    assert y_pred.shape == (batch, output_dim), "y_pred shape mismatch"
    assert jnp.allclose(y_pred, yp_ref, atol=1e-5), "y_pred mismatch"
    assert jnp.allclose(loss, loss_ref, atol=1e-5), "loss mismatch"

    # --- ragged batch (exercises padding + in-kernel row masking) ---
    rb = 12
    xr = jax.random.normal(kx, (rb, input_dim), jnp.float32)
    yr = jax.random.randint(ky, (rb,), 0, output_dim, jnp.int32)
    yp_r = jax.block_until_ready(torch_model_forward(xr, w1, b1, w2, b2))
    loss_r = jax.block_until_ready(torch_model_forward(xr, w1, b1, w2, b2, y=yr))
    yp_ref_r, loss_ref_r = jax_ref(xr, yr)
    assert yp_r.shape == (rb, output_dim), "ragged y_pred shape mismatch"
    assert jnp.allclose(yp_r, yp_ref_r, atol=1e-5), "ragged y_pred mismatch"
    assert jnp.allclose(loss_r, loss_ref_r, atol=1e-5), "ragged loss mismatch"

    # TODO(synk): with compute_dtype=jnp.bfloat16 (recommended on v6e/v7x at scale, passing
    # bf16 x from the caller), relax the atol in these checks -- precision, not correctness.
    print("KERNEL_OK")
</pallas_src>

<mosaic_0001>
module attributes {stable_mosaic.version = 11 : i64} {
  func.func @mlp_kernel(%arg0: i32, %arg1: memref<8x32xf32, #tpu.memory_space<vmem>>, %arg2: memref<32x32xf32, #tpu.memory_space<vmem>>, %arg3: memref<1x32xf32, #tpu.memory_space<vmem>>, %arg4: memref<32x128xf32, #tpu.memory_space<vmem>>, %arg5: memref<1x128xf32, #tpu.memory_space<vmem>>, %arg6: memref<8x128xf32, #tpu.memory_space<vmem>>) attributes {dimension_semantics = [#tpu.dimension_semantics<parallel>], iteration_bounds = array<i64: 1>, scalar_prefetch = 0 : i64, scratch_operands = 0 : i64, tpu.core_type = #tpu.core_type<tc>, window_params = [{transform_indices = @transform_0, window_bounds = array<i64: 8, 32>}, {pipeline_mode = #tpu.pipeline_mode<synchronous>, transform_indices = @transform_1, window_bounds = array<i64: 32, 32>}, {pipeline_mode = #tpu.pipeline_mode<synchronous>, transform_indices = @transform_2, window_bounds = array<i64: 1, 32>}, {pipeline_mode = #tpu.pipeline_mode<synchronous>, transform_indices = @transform_3, window_bounds = array<i64: 32, 128>}, {pipeline_mode = #tpu.pipeline_mode<synchronous>, transform_indices = @transform_4, window_bounds = array<i64: 1, 128>}, {transform_indices = @transform_5, window_bounds = array<i64: 8, 128>}]} {
    %c0 = arith.constant 0 : index
    %c0_0 = arith.constant 0 : index
    %0 = vector.load %arg1[%c0, %c0_0] : memref<8x32xf32, #tpu.memory_space<vmem>>, vector<8x32xf32>
    %c0_1 = arith.constant 0 : index
    %c0_2 = arith.constant 0 : index
    %1 = vector.load %arg2[%c0_1, %c0_2] : memref<32x32xf32, #tpu.memory_space<vmem>>, vector<32x32xf32>
    %c0_3 = arith.constant 0 : index
    %c0_4 = arith.constant 0 : index
    %2 = vector.load %arg3[%c0_3, %c0_4] : memref<1x32xf32, #tpu.memory_space<vmem>>, vector<1x32xf32>
    %c0_5 = arith.constant 0 : index
    %c0_6 = arith.constant 0 : index
    %3 = vector.load %arg4[%c0_5, %c0_6] : memref<32x128xf32, #tpu.memory_space<vmem>>, vector<32x128xf32>
    %c0_7 = arith.constant 0 : index
    %c0_8 = arith.constant 0 : index
    %4 = vector.load %arg5[%c0_7, %c0_8] : memref<1x128xf32, #tpu.memory_space<vmem>>, vector<1x128xf32>
    %cst = arith.constant dense<0.000000e+00> : vector<8x32xf32>
    %5 = tpu.matmul %0, %1, %cst {dimension_numbers = #tpu.dot_dimension_numbers<[1], [0], [0], [1], [0, 0, 1, 1], [], []>} : vector<8x32xf32>, vector<32x32xf32>, vector<8x32xf32> -> vector<8x32xf32>
    %6 = vector.broadcast %2 : vector<1x32xf32> to vector<8x32xf32>
    %7 = arith.addf %5, %6 : vector<8x32xf32>
    %8 = arith.negf %7 : vector<8x32xf32>
    %9 = math.exp %8 : vector<8x32xf32>
    %cst_9 = arith.constant 1.000000e+00 : f32
    %10 = vector.broadcast %cst_9 : f32 to vector<8x32xf32>
    %11 = arith.addf %10, %9 : vector<8x32xf32>
    %12 = arith.divf %10, %11 : vector<8x32xf32>
    %cst_10 = arith.constant dense<0.000000e+00> : vector<8x128xf32>
    %13 = tpu.matmul %12, %3, %cst_10 {dimension_numbers = #tpu.dot_dimension_numbers<[1], [0], [0], [1], [0, 0, 1, 1], [], []>} : vector<8x32xf32>, vector<32x128xf32>, vector<8x128xf32> -> vector<8x128xf32>
    %14 = vector.broadcast %4 : vector<1x128xf32> to vector<8x128xf32>
    %15 = arith.addf %13, %14 : vector<8x128xf32>
    %16 = arith.negf %15 : vector<8x128xf32>
    %17 = math.exp %16 : vector<8x128xf32>
    %cst_11 = arith.constant 1.000000e+00 : f32
    %18 = vector.broadcast %cst_11 : f32 to vector<8x128xf32>
    %19 = arith.addf %18, %17 : vector<8x128xf32>
    %20 = arith.divf %18, %19 : vector<8x128xf32>
    %c0_12 = arith.constant 0 : index
    %c0_13 = arith.constant 0 : index
    %21 = vector.load %arg6[%c0_12, %c0_13] : memref<8x128xf32, #tpu.memory_space<vmem>>, vector<8x128xf32>
    tpu.vector_store %arg6[%c0_12, %c0_13], %20 {strides = array<i32>} : memref<8x128xf32, #tpu.memory_space<vmem>>, vector<8x128xf32>,
    return
  }
  func.func @transform_0(%arg0: i32) -> (i32, i32) {
    %c0_i32 = arith.constant 0 : i32
    %c0_i32_0 = arith.constant 0 : i32
    return %arg0, %c0_i32 : i32, i32
  }
  func.func @transform_1(%arg0: i32) -> (i32, i32) {
    %c0_i32 = arith.constant 0 : i32
    %c0_i32_0 = arith.constant 0 : i32
    %c0_i32_1 = arith.constant 0 : i32
    return %c0_i32, %c0_i32_0 : i32, i32
  }
  func.func @transform_2(%arg0: i32) -> (i32, i32) {
    %c0_i32 = arith.constant 0 : i32
    %c0_i32_0 = arith.constant 0 : i32
    %c0_i32_1 = arith.constant 0 : i32
    return %c0_i32, %c0_i32_0 : i32, i32
  }
  func.func @transform_3(%arg0: i32) -> (i32, i32) {
    %c0_i32 = arith.constant 0 : i32
    %c0_i32_0 = arith.constant 0 : i32
    %c0_i32_1 = arith.constant 0 : i32
    return %c0_i32, %c0_i32_0 : i32, i32
  }
  func.func @transform_4(%arg0: i32) -> (i32, i32) {
    %c0_i32 = arith.constant 0 : i32
    %c0_i32_0 = arith.constant 0 : i32
    %c0_i32_1 = arith.constant 0 : i32
    return %c0_i32, %c0_i32_0 : i32, i32
  }
  func.func @transform_5(%arg0: i32) -> (i32, i32) {
    %c0_i32 = arith.constant 0 : i32
    %c0_i32_0 = arith.constant 0 : i32
    return %arg0, %c0_i32 : i32, i32
  }
}

</mosaic_0001>

<llo_original>
// kernel: tpu_custom_call.1
$region0: #{tpu_custom_call.1}
  #allocation0 [shape = 'u32[]', space=smem, size = 0x4, offset = 0x4, fixed_abs, tag = 'smem constant byte address 0x4 - core index']
  #allocation1 [shape = 'u32[144,128]{1,0:T(1,128)}', space=vmem, size = 0x12000, scoped, tag = 'internal scratch']
  %s0 = inlined_call_operand.hbm [shape: f32[8,32], index: 0, kind: input, shape index: {}]
  %s1 = inlined_call_operand.hbm [shape: f32[32,32], index: 1, kind: input, shape index: {}]
  %s2 = inlined_call_operand.vmem [shape: f32[1,32], index: 2, kind: input, shape index: {}]
  %s3 = inlined_call_operand.hbm [shape: f32[32,128], index: 3, kind: input, shape index: {}]
  %s4 = inlined_call_operand.vmem [shape: f32[1,128], index: 4, kind: input, shape index: {}]
  %s5 = inlined_call_operand.hbm [shape: f32[8,128], index: 5, kind: output, shape index: {}]
  %s6 = sld [smem:[#allocation0]]
  $region42: #{tpu_custom_call.1} parent=0
    _
  %s8 = ssub.s32 1, %s6
  %s9 = scalar_select 0, %s8, %s6
  $region1: #{tpu_custom_call.1} parent=0
    #allocation2 [shape = 'u8[4096]{0}', space=vmem, size = 0x1000, scoped, tag = 'input window, operand 0, single buffered']
    #allocation3 [shape = 's32[1]{0}', space=sflag, size = 0x4, scoped, tag = 'scoped memory for tpu_custom_call.1']
    #allocation4 [shape = 's32[1]{0}', space=sflag, size = 0x4, scoped, tag = 'scoped memory for tpu_custom_call.1']
    #allocation5 [shape = 'u8[16384]{0}', space=vmem, size = 0x4000, scoped, tag = 'input window, operand 1, single buffered']
    #allocation6 [shape = 's32[1]{0}', space=sflag, size = 0x4, scoped, tag = 'scoped memory for tpu_custom_call.1']
    #allocation7 [shape = 'u8[16384]{0}', space=vmem, size = 0x4000, scoped, tag = 'input window, operand 3, single buffered']
    #allocation8 [shape = 'u8[4096]{0}', space=vmem, size = 0x1000, scoped, tag = 'output window, operand 0, single buffered']
    %10 = vsyncpa [#allocation3], 0
    %11 = vsyncpa [#allocation6], 0
    %12 = vsyncpa [#allocation4], 0
    // Predicated region
    $region2: #{tpu_custom_call.1} parent=1 // pred_check
      _
    $region3: #{tpu_custom_call.1} parent=1 // pred_check_branch
      %14 = sbr.rel (0) target = $region5
    $region4: #{tpu_custom_call.1} parent=1 // pred_region
      %s16 = ssub.s32 128, 128
      %17 = vsyncadd [#allocation3], %s16
      %s19 = sshll.u32 [#allocation2], 4
      %s20 = int_to_ptr.vmem [resolvable:$true] %s19
      %22 = dma.hbm_to_vmem [thread:$0]  %s0, 128, %s20, [#allocation3]
    $region5: #{tpu_custom_call.1} parent=1 // pred_fallthru
      _
    // Predicated region
    $region6: #{tpu_custom_call.1} parent=1 // pred_check
      _
    $region7: #{tpu_custom_call.1} parent=1 // pred_check_branch
      %24 = sbr.rel (0) target = $region9
    $region8: #{tpu_custom_call.1} parent=1 // pred_region
      %s26 = ssub.s32 512, 512
      %27 = vsyncadd [#allocation6], %s26
      %s28 = sshll.u32 [#allocation5], 4
      %s29 = int_to_ptr.vmem [resolvable:$true] %s28
      %34 = dma.hbm_to_vmem [thread:$0]  %s1, 512, %s29, [#allocation6], 128, 128, 8
    $region9: #{tpu_custom_call.1} parent=1 // pred_fallthru
      _
    // Predicated region
    $region10: #{tpu_custom_call.1} parent=1 // pred_check
      _
    $region11: #{tpu_custom_call.1} parent=1 // pred_check_branch
      %36 = sbr.rel (0) target = $region13
    $region12: #{tpu_custom_call.1} parent=1 // pred_region
      _
    $region13: #{tpu_custom_call.1} parent=1 // pred_fallthru
      _
    // Predicated region
    $region14: #{tpu_custom_call.1} parent=1 // pred_check
      _
    $region15: #{tpu_custom_call.1} parent=1 // pred_check_branch
      %38 = sbr.rel (0) target = $region17
    $region16: #{tpu_custom_call.1} parent=1 // pred_region
      %s40 = ssub.s32 512, 512
      %41 = vsyncadd [#allocation6], %s40
      %s42 = sshll.u32 [#allocation7], 4
      %s43 = int_to_ptr.vmem [resolvable:$true] %s42
      %48 = dma.hbm_to_vmem [thread:$0]  %s3, 512, %s43, [#allocation6], 128, 128, 8
    $region17: #{tpu_custom_call.1} parent=1 // pred_fallthru
      _
    // Predicated region
    $region18: #{tpu_custom_call.1} parent=1 // pred_check
      _
    $region19: #{tpu_custom_call.1} parent=1 // pred_check_branch
      %50 = sbr.rel (0) target = $region21
    $region20: #{tpu_custom_call.1} parent=1 // pred_region
      _
    $region21: #{tpu_custom_call.1} parent=1 // pred_fallthru
      _
    // Predicated region
    $region22: #{tpu_custom_call.1} parent=1 // pred_check
      _
    $region23: #{tpu_custom_call.1} parent=1 // pred_check_branch
      %52 = sbr.rel (0) target = $region25
    $region24: #{tpu_custom_call.1} parent=1 // pred_region
      %53 = dma.done [#allocation3], 128
    $region25: #{tpu_custom_call.1} parent=1 // pred_fallthru
      _
    // Predicated region
    $region26: #{tpu_custom_call.1} parent=1 // pred_check
      _
    $region27: #{tpu_custom_call.1} parent=1 // pred_check_branch
      %55 = sbr.rel (0) target = $region29
    $region28: #{tpu_custom_call.1} parent=1 // pred_region
      %56 = dma.done [#allocation6], 512
    $region29: #{tpu_custom_call.1} parent=1 // pred_fallthru
      _
    // Predicated region
    $region30: #{tpu_custom_call.1} parent=1 // pred_check
      _
    $region31: #{tpu_custom_call.1} parent=1 // pred_check_branch
      %58 = sbr.rel (0) target = $region33
    $region32: #{tpu_custom_call.1} parent=1 // pred_region
      %59 = dma.done [#allocation6], 512
    $region33: #{tpu_custom_call.1} parent=1 // pred_fallthru
      _
    %v60 = vld [vmem:[#allocation2] sm:$0xff]
    %v61 = vld [vmem:[#allocation5] sm:$0xff]
    %v62 = vld [vmem:[#allocation5 + $0x8] sm:$0xff]
    %v63 = vld [vmem:[#allocation5 + $0x10] sm:$0xff]
    %v64 = vld [vmem:[#allocation5 + $0x18] sm:$0xff]
    %v65 = vld [vmem:[%s2] sm:$0x1]
    %v66 = vld [vmem:[#allocation7] sm:$0xff]
    %v67 = vld [vmem:[#allocation7 + $0x8] sm:$0xff]
    %v68 = vld [vmem:[#allocation7 + $0x10] sm:$0xff]
    %v69 = vld [vmem:[#allocation7 + $0x18] sm:$0xff]
    %v70 = vld [vmem:[%s4] sm:$0x1]
    %v72 = vlaneseq
    %v73 = vshrl.u32 %v72, 7
    %v74 = vsub.s32 0, %v73
    %v75 = vrot.slane %v65, %v74
    %vm77 = vcmask 261120
    %v79 = vsel %vm77, %v60, 0
    %81 = vmatprep.subr.mxu0 0.0
    %82 = vmatpush1.msra.mxu0 0.0
    %83 = vmatprep.subr.mxu0 0.0
    %84 = vmatpush1.msra.mxu0 0.0
    %85 = vmatprep.subr.mxu0 0.0
    %86 = vmatpush1.msra.mxu0 0.0
    %87 = vmatprep.subr.mxu0 0.0
    %88 = vmatpush1.msra.mxu0 0.0
    %89 = vmatprep.subr.mxu0 0.0
    %90 = vmatpush1.msra.mxu0 0.0
    %91 = vmatprep.subr.mxu0 0.0
    %92 = vmatpush1.msra.mxu0 0.0
    %93 = vmatprep.subr.mxu0 0.0
    %94 = vmatpush1.msra.mxu0 0.0
    %95 = vmatprep.subr.mxu0 0.0
    %96 = vmatpush1.msra.mxu0 0.0
    %97 = vmatprep.subr.mxu0 0.0
    %98 = vmatpush1.msra.mxu0 0.0
    %99 = vmatprep.subr.mxu0 0.0
    %100 = vmatpush1.msra.mxu0 0.0
    %101 = vmatprep.subr.mxu0 0.0
    %102 = vmatpush1.msra.mxu0 0.0
    %103 = vmatprep.subr.mxu0 0.0
    %104 = vmatpush1.msra.mxu0 0.0
    %105 = vmatprep.subr.mxu0 0.0
    %106 = vmatpush1.msra.mxu0 %v64
    %107 = vmatprep.subr.mxu0 0.0
    %108 = vmatpush1.msra.mxu0 %v63
    %109 = vmatprep.subr.mxu0 0.0
    %110 = vmatpush1.msra.mxu0 %v62
    %111 = vmatprep.subr.mxu0 0.0
    %112 = vmatpush1.msra.mxu0 %v61
    %113 = vmatprep.subr.mxu0 0.0
    %114 = vmatpush2.msra.mxu0 0.0
    %115 = vmatprep.subr.mxu0 0.0
    %116 = vmatpush2.msra.mxu0 0.0
    %117 = vmatprep.subr.mxu0 0.0
    %118 = vmatpush2.msra.mxu0 0.0
    %119 = vmatprep.subr.mxu0 0.0
    %120 = vmatpush2.msra.mxu0 0.0
    %121 = vmatprep.subr.mxu0 0.0
    %122 = vmatpush2.msra.mxu0 0.0
    %123 = vmatprep.subr.mxu0 0.0
    %124 = vmatpush2.msra.mxu0 0.0
    %125 = vmatprep.subr.mxu0 0.0
    %126 = vmatpush2.msra.mxu0 0.0
    %127 = vmatprep.subr.mxu0 0.0
    %128 = vmatpush2.msra.mxu0 0.0
    %129 = vmatprep.subr.mxu0 0.0
    %130 = vmatpush2.msra.mxu0 0.0
    %131 = vmatprep.subr.mxu0 0.0
    %132 = vmatpush2.msra.mxu0 0.0
    %133 = vmatprep.subr.mxu0 0.0
    %134 = vmatpush2.msra.mxu0 0.0
    %135 = vmatprep.subr.mxu0 0.0
    %136 = vmatpush2.msra.mxu0 0.0
    %137 = vmatprep.subr.mxu0 0.0
    %138 = vmatpush2.msra.mxu0 0.0
    %139 = vmatprep.subr.mxu0 0.0
    %140 = vmatpush2.msra.mxu0 0.0
    %141 = vmatprep.subr.mxu0 0.0
    %142 = vmatpush2.msra.mxu0 0.0
    %143 = vmatprep.subr.mxu0 0.0
    %144 = vmatpush2.msra.mxu0 0.0
    %145 = vmatprep.mubr.f32.mxu0 0.0
    %146 = vmatmul.mubr.f32.gmra.mxu0 %v79
    %v147 = vpop.f32.mrf.mxu0
    %v148 = vadd.f32 %v75, %v147
    %v149 = vpop.f32.mrf.mxu0
    %150 = vdwg.mxu0
    %v151 = vxor.u32 %v148, 2147483648
    %v152 = vmul.f32 %v151, 1.442695
    %v153 = vpow.pop %v152
    %v154 = vadd.f32 %v153, 1.0
    %v155 = vrcp.pop %v154
    %v156 = vmul.f32 1.0, %v155
    %v158 = vlaneseq
    %v159 = vshrl.u32 %v158, 7
    %v160 = vsub.s32 0, %v159
    %v161 = vrot.slane %v70, %v160
    %v164 = vsel %vm77, %v156, 0
    %166 = vmatprep.subr.mxu0 0.0
    %167 = vmatpush1.msra.mxu0 0.0
    %168 = vmatprep.subr.mxu0 0.0
    %169 = vmatpush1.msra.mxu0 0.0
    %170 = vmatprep.subr.mxu0 0.0
    %171 = vmatpush1.msra.mxu0 0.0
    %172 = vmatprep.subr.mxu0 0.0
    %173 = vmatpush1.msra.mxu0 0.0
    %174 = vmatprep.subr.mxu0 0.0
    %175 = vmatpush1.msra.mxu0 0.0
    %176 = vmatprep.subr.mxu0 0.0
    %177 = vmatpush1.msra.mxu0 0.0
    %178 = vmatprep.subr.mxu0 0.0
    %179 = vmatpush1.msra.mxu0 0.0
    %180 = vmatprep.subr.mxu0 0.0
    %181 = vmatpush1.msra.mxu0 0.0
    %182 = vmatprep.subr.mxu0 0.0
    %183 = vmatpush1.msra.mxu0 0.0
    %184 = vmatprep.subr.mxu0 0.0
    %185 = vmatpush1.msra.mxu0 0.0
    %186 = vmatprep.subr.mxu0 0.0
    %187 = vmatpush1.msra.mxu0 0.0
    %188 = vmatprep.subr.mxu0 0.0
    %189 = vmatpush1.msra.mxu0 0.0
    %190 = vmatprep.subr.mxu0 0.0
    %191 = vmatpush1.msra.mxu0 %v69
    %192 = vmatprep.subr.mxu0 0.0
    %193 = vmatpush1.msra.mxu0 %v68
    %194 = vmatprep.subr.mxu0 0.0
    %195 = vmatpush1.msra.mxu0 %v67
    %196 = vmatprep.subr.mxu0 0.0
    %197 = vmatpush1.msra.mxu0 %v66
    %198 = vmatprep.subr.mxu0 0.0
    %199 = vmatpush2.msra.mxu0 0.0
    %200 = vmatprep.subr.mxu0 0.0
    %201 = vmatpush2.msra.mxu0 0.0
    %202 = vmatprep.subr.mxu0 0.0
    %203 = vmatpush2.msra.mxu0 0.0
    %204 = vmatprep.subr.mxu0 0.0
    %205 = vmatpush2.msra.mxu0 0.0
    %206 = vmatprep.subr.mxu0 0.0
    %207 = vmatpush2.msra.mxu0 0.0
    %208 = vmatprep.subr.mxu0 0.0
    %209 = vmatpush2.msra.mxu0 0.0
    %210 = vmatprep.subr.mxu0 0.0
    %211 = vmatpush2.msra.mxu0 0.0
    %212 = vmatprep.subr.mxu0 0.0
    %213 = vmatpush2.msra.mxu0 0.0
    %214 = vmatprep.subr.mxu0 0.0
    %215 = vmatpush2.msra.mxu0 0.0
    %216 = vmatprep.subr.mxu0 0.0
    %217 = vmatpush2.msra.mxu0 0.0
    %218 = vmatprep.subr.mxu0 0.0
    %219 = vmatpush2.msra.mxu0 0.0
    %220 = vmatprep.subr.mxu0 0.0
    %221 = vmatpush2.msra.mxu0 0.0
    %222 = vmatprep.subr.mxu0 0.0
    %223 = vmatpush2.msra.mxu0 0.0
    %224 = vmatprep.subr.mxu0 0.0
    %225 = vmatpush2.msra.mxu0 0.0
    %226 = vmatprep.subr.mxu0 0.0
    %227 = vmatpush2.msra.mxu0 0.0
    %228 = vmatprep.subr.mxu0 0.0
    %229 = vmatpush2.msra.mxu0 0.0
    %230 = vmatprep.mubr.f32.mxu0 0.0
    %231 = vmatmul.mubr.f32.gmra.mxu0 %v164
    %v232 = vpop.f32.mrf.mxu0
    %v233 = vadd.f32 %v161, %v232
    %v234 = vpop.f32.mrf.mxu0
    %235 = vdwg.mxu0
    %v236 = vxor.u32 %v233, 2147483648
    %v237 = vmul.f32 %v236, 1.442695
    %v238 = vpow.pop %v237
    %v239 = vadd.f32 %v238, 1.0
    %v240 = vrcp.pop %v239
    %v241 = vmul.f32 1.0, %v240
    %242 = vst [vmem:[#allocation8] sm:$0xff] %v241
    // Predicated region
    $region34: #{tpu_custom_call.1} parent=1 // pred_check
      _
    $region35: #{tpu_custom_call.1} parent=1 // pred_check_branch
      %244 = sbr.rel (0) target = $region37
    $region36: #{tpu_custom_call.1} parent=1 // pred_region
      %s246 = ssub.s32 128, 128
      %247 = vsyncadd [#allocation4], %s246
      %s249 = sshll.u32 [#allocation8], 4
      %s250 = int_to_ptr.vmem [resolvable:$true] %s249
      %252 = dma.vmem_to_hbm [thread:$0]  %s250, 128, %s5, [#allocation4]
    $region37: #{tpu_custom_call.1} parent=1 // pred_fallthru
      _
    // Predicated region
    $region38: #{tpu_custom_call.1} parent=1 // pred_check
      _
    $region39: #{tpu_custom_call.1} parent=1 // pred_check_branch
      %254 = sbr.rel (0) target = $region41
    $region40: #{tpu_custom_call.1} parent=1 // pred_region
      %255 = dma.done [#allocation4], 128
    $region41: #{tpu_custom_call.1} parent=1 // pred_fallthru
      _
    %256 = vsyncpa [#allocation3], 1
    %257 = vsyncpa [#allocation6], 1
    %258 = vsyncpa [#allocation4], 1

</llo_original>
